<compile_context>
chip_gen: v7x
topology: tpu7x:2x2x1
jax: 0.10.0
libtpu: 0.0.40
codegen_flags: <defaults>
</compile_context>

<pallas_src>
import jax
import jax.numpy as jnp
from jax.experimental import pallas as pl
from jax.experimental.pallas import tpu as pltpu

# ----------------------------- model dims -----------------------------------
BATCH = 2
CHANNELS = 4
SPATIAL = 16
IN_DIM = CHANNELS * SPATIAL * SPATIAL   # 1024
HID1 = 256
HID2 = 128
EMB_DIM = 64

_VMEM = pl.BlockSpec(memory_space=pltpu.MemorySpace.VMEM)


# ----------------------------- Pallas kernels -------------------------------
def _branch(x_ref, w1_bf16, w1s, b1, w2, b2, w3, b3, out_ref):
    """One embedding-net branch: (B, IN_DIM) f32 -> (B, EMB_DIM) f32."""
    x = x_ref[...].astype(jnp.bfloat16)                                   # (B, IN)
    h = jnp.dot(x, w1_bf16, preferred_element_type=jnp.float32) * w1s + b1
    h = jnp.maximum(h, 0.0)                                               # (B, HID1) f32
    h = jnp.dot(h.astype(jnp.bfloat16), w2,
                preferred_element_type=jnp.float32) + b2
    h = jnp.maximum(h, 0.0)                                               # (B, HID2) f32
    h = jnp.dot(h.astype(jnp.bfloat16), w3,
                preferred_element_type=jnp.float32) + b3                  # (B, EMB) f32
    out_ref[...] = h.astype(out_ref.dtype)


def _siamese_kernel(x1_ref, x2_ref, w1q_ref, w1s_ref, b1_ref, w2_ref, b2_ref,
                    w3_ref, b3_ref, out1_ref, out2_ref):
    """Both Siamese branches against the shared, VMEM-resident weights."""
    # Dequantize the dominant weight once (int8 -> bf16 on the VPU); the
    # per-output-channel scale is applied to the tiny matmul result instead
    # of the big weight tensor.
    w1 = w1q_ref[...].astype(jnp.float32).astype(jnp.bfloat16)            # (IN, HID1)
    shared = (w1, w1s_ref[...], b1_ref[...], w2_ref[...], b2_ref[...],
              w3_ref[...], b3_ref[...])
    _branch(x1_ref, *shared, out1_ref)
    _branch(x2_ref, *shared, out2_ref)


def _embed_kernel(x_ref, w1q_ref, w1s_ref, b1_ref, w2_ref, b2_ref,
                  w3_ref, b3_ref, out_ref):
    """Single-branch kernel backing SiameseNet.get_embedding()."""
    w1 = w1q_ref[...].astype(jnp.float32).astype(jnp.bfloat16)
    _branch(x_ref, w1, w1s_ref[...], b1_ref[...], w2_ref[...], b2_ref[...],
            w3_ref[...], b3_ref[...], out_ref)


# ----------------------------- wrappers --------------------------------------
def _weight_bytes(kparams):
    return sum(int(a.size) * a.dtype.itemsize for a in kparams)


def siamese_forward(kparams, x1, x2):
    """SiameseNet.forward: shared embedding net applied to both inputs,
    fused into a single gridless kernel launch (weights DMA'd once)."""
    b1_rows = x1.shape[0]
    b2_rows = x2.shape[0]
    x1f = x1.reshape(b1_rows, -1)          # contiguous NCHW flatten: free reshape
    x2f = x2.reshape(b2_rows, -1)
    rows = b1_rows + b2_rows
    flops = 2 * rows * (IN_DIM * HID1 + HID1 * HID2 + HID2 * EMB_DIM)
    bytes_accessed = (x1f.size * 4 + x2f.size * 4
                      + _weight_bytes(kparams)
                      + rows * EMB_DIM * 4)
    out1, out2 = pl.pallas_call(
        _siamese_kernel,
        out_shape=(jax.ShapeDtypeStruct((b1_rows, EMB_DIM), jnp.float32),
                   jax.ShapeDtypeStruct((b2_rows, EMB_DIM), jnp.float32)),
        in_specs=[_VMEM] * 9,
        out_specs=(_VMEM, _VMEM),
        cost_estimate=pl.CostEstimate(
            flops=flops, transcendentals=0, bytes_accessed=bytes_accessed),
    )(x1f, x2f, *kparams)
    return out1, out2


def get_embedding(kparams, x):
    """SiameseNet.get_embedding: one branch through the same shared weights."""
    rows = x.shape[0]
    xf = x.reshape(rows, -1)
    flops = 2 * rows * (IN_DIM * HID1 + HID1 * HID2 + HID2 * EMB_DIM)
    bytes_accessed = xf.size * 4 + _weight_bytes(kparams) + rows * EMB_DIM * 4
    return pl.pallas_call(
        _embed_kernel,
        out_shape=jax.ShapeDtypeStruct((rows, EMB_DIM), jnp.float32),
        in_specs=[_VMEM] * 8,
        out_specs=_VMEM,
        cost_estimate=pl.CostEstimate(
            flops=flops, transcendentals=0, bytes_accessed=bytes_accessed),
    )(xf, *kparams)


# ----------------------------- parameters -----------------------------------
def init_params(key):
    """Deterministic f32 parameters (PyTorch nn.Linear-like uniform fan-in)."""
    ks = jax.random.split(key, 6)

    def lin(kw, kb, fan_in, fan_out):
        bound = 1.0 / jnp.sqrt(fan_in)
        w = jax.random.uniform(kw, (fan_in, fan_out), jnp.float32, -bound, bound)
        b = jax.random.uniform(kb, (1, fan_out), jnp.float32, -bound, bound)
        return w, b

    w1, b1 = lin(ks[0], ks[1], IN_DIM, HID1)
    w2, b2 = lin(ks[2], ks[3], HID1, HID2)
    w3, b3 = lin(ks[4], ks[5], HID2, EMB_DIM)
    return (w1, b1, w2, b2, w3, b3)


def prepare_kernel_params(params_f32):
    """int8-quantize w1 (per-output-channel scale) and cast w2/w3 to bf16."""
    w1, b1, w2, b2, w3, b3 = params_f32
    amax = jnp.maximum(jnp.max(jnp.abs(w1), axis=0, keepdims=True), 1e-8)
    w1_scale = (amax / 127.0).astype(jnp.float32)                      # (1, HID1)
    w1_q = jnp.clip(jnp.round(w1 / w1_scale), -127.0, 127.0).astype(jnp.int8)
    return (w1_q, w1_scale, b1,
            w2.astype(jnp.bfloat16), b2,
            w3.astype(jnp.bfloat16), b3)


# ----------------------------- main ------------------------------------------
if __name__ == "__main__":
    key = jax.random.PRNGKey(0)
    k_params, k1, k2 = jax.random.split(key, 3)

    params_f32 = init_params(k_params)
    kparams = prepare_kernel_params(params_f32)

    x1 = jax.random.normal(k1, (BATCH, CHANNELS, SPATIAL, SPATIAL), jnp.float32)
    x2 = jax.random.normal(k2, (BATCH, CHANNELS, SPATIAL, SPATIAL), jnp.float32)

    out1, out2 = jax.jit(siamese_forward)(kparams, x1, x2)
    jax.block_until_ready((out1, out2))

    emb = jax.jit(get_embedding)(kparams, x1)
    jax.block_until_ready(emb)

    # sanity: plain-JAX reference mirroring the kernel's int8/bf16 math.
    w1_q, w1_s, b1, w2_bf, b2, w3_bf, b3 = kparams

    def ref_embed(xf):
        bf = lambda a: a.astype(jnp.bfloat16).astype(jnp.float32)
        h = jnp.maximum(bf(xf) @ w1_q.astype(jnp.float32) * w1_s + b1, 0.0)
        h = jnp.maximum(bf(h) @ w2_bf.astype(jnp.float32) + b2, 0.0)
        return bf(h) @ w3_bf.astype(jnp.float32) + b3

    r1 = ref_embed(x1.reshape(BATCH, -1))
    r2 = ref_embed(x2.reshape(BATCH, -1))
    assert out1.shape == (BATCH, EMB_DIM) and out2.shape == (BATCH, EMB_DIM)
    assert jnp.allclose(out1, r1, atol=2e-2, rtol=2e-2)
    assert jnp.allclose(out2, r2, atol=2e-2, rtol=2e-2)
    assert jnp.allclose(emb, r1, atol=2e-2, rtol=2e-2)

    print("KERNEL_OK")
</pallas_src>

<mosaic_0001>
module attributes {stable_mosaic.version = 11 : i64} {
  func.func @_siamese_kernel(%arg0: memref<2x1024xf32, #tpu.memory_space<vmem>>, %arg1: memref<2x1024xf32, #tpu.memory_space<vmem>>, %arg2: memref<1024x256xi8, #tpu.memory_space<vmem>>, %arg3: memref<1x256xf32, #tpu.memory_space<vmem>>, %arg4: memref<1x256xf32, #tpu.memory_space<vmem>>, %arg5: memref<256x128xbf16, #tpu.memory_space<vmem>>, %arg6: memref<1x128xf32, #tpu.memory_space<vmem>>, %arg7: memref<128x64xbf16, #tpu.memory_space<vmem>>, %arg8: memref<1x64xf32, #tpu.memory_space<vmem>>, %arg9: memref<2x64xf32, #tpu.memory_space<vmem>>, %arg10: memref<2x64xf32, #tpu.memory_space<vmem>>) attributes {dimension_semantics = [], scalar_prefetch = 0 : i64, scratch_operands = 0 : i64, tpu.core_type = #tpu.core_type<tc>} {
    %c0 = arith.constant 0 : index
    %c0_0 = arith.constant 0 : index
    %0 = vector.load %arg2[%c0, %c0_0] : memref<1024x256xi8, #tpu.memory_space<vmem>>, vector<1024x256xi8>
    %1 = arith.sitofp %0 : vector<1024x256xi8> to vector<1024x256xf32>
    %2 = arith.truncf %1 : vector<1024x256xf32> to vector<1024x256xbf16>
    %c0_1 = arith.constant 0 : index
    %c0_2 = arith.constant 0 : index
    %3 = vector.load %arg3[%c0_1, %c0_2] : memref<1x256xf32, #tpu.memory_space<vmem>>, vector<1x256xf32>
    %c0_3 = arith.constant 0 : index
    %c0_4 = arith.constant 0 : index
    %4 = vector.load %arg4[%c0_3, %c0_4] : memref<1x256xf32, #tpu.memory_space<vmem>>, vector<1x256xf32>
    %c0_5 = arith.constant 0 : index
    %c0_6 = arith.constant 0 : index
    %5 = vector.load %arg5[%c0_5, %c0_6] : memref<256x128xbf16, #tpu.memory_space<vmem>>, vector<256x128xbf16>
    %c0_7 = arith.constant 0 : index
    %c0_8 = arith.constant 0 : index
    %6 = vector.load %arg6[%c0_7, %c0_8] : memref<1x128xf32, #tpu.memory_space<vmem>>, vector<1x128xf32>
    %c0_9 = arith.constant 0 : index
    %c0_10 = arith.constant 0 : index
    %7 = vector.load %arg7[%c0_9, %c0_10] : memref<128x64xbf16, #tpu.memory_space<vmem>>, vector<128x64xbf16>
    %c0_11 = arith.constant 0 : index
    %c0_12 = arith.constant 0 : index
    %8 = vector.load %arg8[%c0_11, %c0_12] : memref<1x64xf32, #tpu.memory_space<vmem>>, vector<1x64xf32>
    %c0_13 = arith.constant 0 : index
    %c0_14 = arith.constant 0 : index
    %9 = vector.load %arg0[%c0_13, %c0_14] : memref<2x1024xf32, #tpu.memory_space<vmem>>, vector<2x1024xf32>
    %10 = arith.truncf %9 : vector<2x1024xf32> to vector<2x1024xbf16>
    %cst = arith.constant dense<0.000000e+00> : vector<2x256xf32>
    %11 = tpu.matmul %10, %2, %cst {dimension_numbers = #tpu.dot_dimension_numbers<[1], [0], [0], [1], [0, 0, 1, 1], [], []>} : vector<2x1024xbf16>, vector<1024x256xbf16>, vector<2x256xf32> -> vector<2x256xf32>
    %12 = vector.broadcast %3 : vector<1x256xf32> to vector<2x256xf32>
    %13 = arith.mulf %11, %12 : vector<2x256xf32>
    %14 = vector.broadcast %4 : vector<1x256xf32> to vector<2x256xf32>
    %15 = arith.addf %13, %14 : vector<2x256xf32>
    %cst_15 = arith.constant 0.000000e+00 : f32
    %16 = vector.broadcast %cst_15 : f32 to vector<2x256xf32>
    %17 = arith.maximumf %15, %16 : vector<2x256xf32>
    %18 = arith.truncf %17 : vector<2x256xf32> to vector<2x256xbf16>
    %cst_16 = arith.constant dense<0.000000e+00> : vector<2x128xf32>
    %19 = tpu.matmul %18, %5, %cst_16 {dimension_numbers = #tpu.dot_dimension_numbers<[1], [0], [0], [1], [0, 0, 1, 1], [], []>} : vector<2x256xbf16>, vector<256x128xbf16>, vector<2x128xf32> -> vector<2x128xf32>
    %20 = vector.broadcast %6 : vector<1x128xf32> to vector<2x128xf32>
    %21 = arith.addf %19, %20 : vector<2x128xf32>
    %cst_17 = arith.constant 0.000000e+00 : f32
    %22 = vector.broadcast %cst_17 : f32 to vector<2x128xf32>
    %23 = arith.maximumf %21, %22 : vector<2x128xf32>
    %24 = arith.truncf %23 : vector<2x128xf32> to vector<2x128xbf16>
    %cst_18 = arith.constant dense<0.000000e+00> : vector<2x64xf32>
    %25 = tpu.matmul %24, %7, %cst_18 {dimension_numbers = #tpu.dot_dimension_numbers<[1], [0], [0], [1], [0, 0, 1, 1], [], []>} : vector<2x128xbf16>, vector<128x64xbf16>, vector<2x64xf32> -> vector<2x64xf32>
    %26 = vector.broadcast %8 : vector<1x64xf32> to vector<2x64xf32>
    %27 = arith.addf %25, %26 : vector<2x64xf32>
    %c0_19 = arith.constant 0 : index
    %c0_20 = arith.constant 0 : index
    %28 = vector.load %arg9[%c0_19, %c0_20] : memref<2x64xf32, #tpu.memory_space<vmem>>, vector<2x64xf32>
    tpu.vector_store %arg9[%c0_19, %c0_20], %27 {strides = array<i32>} : memref<2x64xf32, #tpu.memory_space<vmem>>, vector<2x64xf32>,
    %c0_21 = arith.constant 0 : index
    %c0_22 = arith.constant 0 : index
    %29 = vector.load %arg1[%c0_21, %c0_22] : memref<2x1024xf32, #tpu.memory_space<vmem>>, vector<2x1024xf32>
    %30 = arith.truncf %29 : vector<2x1024xf32> to vector<2x1024xbf16>
    %cst_23 = arith.constant dense<0.000000e+00> : vector<2x256xf32>
    %31 = tpu.matmul %30, %2, %cst_23 {dimension_numbers = #tpu.dot_dimension_numbers<[1], [0], [0], [1], [0, 0, 1, 1], [], []>} : vector<2x1024xbf16>, vector<1024x256xbf16>, vector<2x256xf32> -> vector<2x256xf32>
    %32 = vector.broadcast %3 : vector<1x256xf32> to vector<2x256xf32>
    %33 = arith.mulf %31, %32 : vector<2x256xf32>
    %34 = vector.broadcast %4 : vector<1x256xf32> to vector<2x256xf32>
    %35 = arith.addf %33, %34 : vector<2x256xf32>
    %cst_24 = arith.constant 0.000000e+00 : f32
    %36 = vector.broadcast %cst_24 : f32 to vector<2x256xf32>
    %37 = arith.maximumf %35, %36 : vector<2x256xf32>
    %38 = arith.truncf %37 : vector<2x256xf32> to vector<2x256xbf16>
    %cst_25 = arith.constant dense<0.000000e+00> : vector<2x128xf32>
    %39 = tpu.matmul %38, %5, %cst_25 {dimension_numbers = #tpu.dot_dimension_numbers<[1], [0], [0], [1], [0, 0, 1, 1], [], []>} : vector<2x256xbf16>, vector<256x128xbf16>, vector<2x128xf32> -> vector<2x128xf32>
    %40 = vector.broadcast %6 : vector<1x128xf32> to vector<2x128xf32>
    %41 = arith.addf %39, %40 : vector<2x128xf32>
    %cst_26 = arith.constant 0.000000e+00 : f32
    %42 = vector.broadcast %cst_26 : f32 to vector<2x128xf32>
    %43 = arith.maximumf %41, %42 : vector<2x128xf32>
    %44 = arith.truncf %43 : vector<2x128xf32> to vector<2x128xbf16>
    %cst_27 = arith.constant dense<0.000000e+00> : vector<2x64xf32>
    %45 = tpu.matmul %44, %7, %cst_27 {dimension_numbers = #tpu.dot_dimension_numbers<[1], [0], [0], [1], [0, 0, 1, 1], [], []>} : vector<2x128xbf16>, vector<128x64xbf16>, vector<2x64xf32> -> vector<2x64xf32>
    %46 = vector.broadcast %8 : vector<1x64xf32> to vector<2x64xf32>
    %47 = arith.addf %45, %46 : vector<2x64xf32>
    %c0_28 = arith.constant 0 : index
    %c0_29 = arith.constant 0 : index
    %48 = vector.load %arg10[%c0_28, %c0_29] : memref<2x64xf32, #tpu.memory_space<vmem>>, vector<2x64xf32>
    tpu.vector_store %arg10[%c0_28, %c0_29], %47 {strides = array<i32>} : memref<2x64xf32, #tpu.memory_space<vmem>>, vector<2x64xf32>,
    return
  }
}

</mosaic_0001>

<llo_original>
// kernel: siamese_forward.1
$region0: #{siamese_forward.1}
  #allocation0 [shape = 'u32[]', space=smem, size = 0x4, offset = 0x4, fixed_abs, tag = 'smem constant byte address 0x4 - core index']
  #allocation1 [shape = 'u32[144,128]{1,0:T(1,128)}', space=vmem, size = 0x12000, scoped, tag = 'internal scratch']
  %s0 = inlined_call_operand.vmem [shape: f32[2,1024], index: 0, kind: input, shape index: {}]
  %s1 = inlined_call_operand.vmem [shape: f32[2,1024], index: 1, kind: input, shape index: {}]
  %s2 = inlined_call_operand.hbm [shape: s8[1024,256], index: 2, kind: input, shape index: {}]
  %s3 = inlined_call_operand.vmem [shape: f32[1,256], index: 3, kind: input, shape index: {}]
  %s4 = inlined_call_operand.vmem [shape: f32[1,256], index: 4, kind: input, shape index: {}]
  %s5 = inlined_call_operand.vmem [shape: bf16[256,128], index: 5, kind: input, shape index: {}]
  %s6 = inlined_call_operand.vmem [shape: f32[1,128], index: 6, kind: input, shape index: {}]
  %s7 = inlined_call_operand.vmem [shape: bf16[128,64], index: 7, kind: input, shape index: {}]
  %s8 = inlined_call_operand.vmem [shape: f32[1,64], index: 8, kind: input, shape index: {}]
  %s9 = inlined_call_operand.hbm [shape: f32[2,64], index: 9, kind: output, shape index: {0}]
  %s10 = inlined_call_operand.hbm [shape: f32[2,64], index: 10, kind: output, shape index: {1}]
  %11 = xla_tuple %s9, %s10
  %s12 = sld [smem:[#allocation0]]
  $region58: #{siamese_forward.1} parent=0
    _
  %s14 = ssub.s32 1, %s12
  %s15 = scalar_select 0, %s14, %s12
  $region1: #{siamese_forward.1} parent=0
    #allocation2 [shape = 'u8[262144]{0}', space=vmem, size = 0x40000, scoped, tag = 'input window, operand 2, single buffered']
    #allocation3 [shape = 's32[1]{0}', space=sflag, size = 0x4, scoped, tag = 'scoped memory for siamese_forward.1']
    #allocation4 [shape = 's32[1]{0}', space=sflag, size = 0x4, scoped, tag = 'scoped memory for siamese_forward.1']
    #allocation5 [shape = 'u8[1024]{0}', space=vmem, size = 0x400, scoped, tag = 'output window, operand 0, single buffered']
    #allocation6 [shape = 'u8[1024]{0}', space=vmem, size = 0x400, scoped, tag = 'output window, operand 1, single buffered']
    #allocation7 [shape = 's32[1]{0}', space=sflag, size = 0x4, scoped, tag = 'scoped memory for siamese_forward.1']
    %16 = vsyncpa [#allocation3], 0
    %17 = vsyncpa [#allocation4], 0
    %18 = vsyncpa [#allocation7], 0
    // Predicated region
    $region2: #{siamese_forward.1} parent=1 // pred_check
      _
    $region3: #{siamese_forward.1} parent=1 // pred_check_branch
      %20 = sbr.rel (0) target = $region5
    $region4: #{siamese_forward.1} parent=1 // pred_region
      _
    $region5: #{siamese_forward.1} parent=1 // pred_fallthru
      _
    // Predicated region
    $region6: #{siamese_forward.1} parent=1 // pred_check
      _
    $region7: #{siamese_forward.1} parent=1 // pred_check_branch
      %22 = sbr.rel (0) target = $region9
    $region8: #{siamese_forward.1} parent=1 // pred_region
      _
    $region9: #{siamese_forward.1} parent=1 // pred_fallthru
      _
    // Predicated region
    $region10: #{siamese_forward.1} parent=1 // pred_check
      _
    $region11: #{siamese_forward.1} parent=1 // pred_check_branch
      %24 = sbr.rel (0) target = $region13
    $region12: #{siamese_forward.1} parent=1 // pred_region
      %s26 = ssub.s32 8192, 8192
      %27 = vsyncadd [#allocation3], %s26
      %s28 = sshll.u32 [#allocation2], 4
      %s29 = int_to_ptr.vmem [resolvable:$true] %s28
      %34 = dma.hbm_to_vmem [thread:$0]  %s2, 8192, %s29, [#allocation3], 256, 256, 16
    $region13: #{siamese_forward.1} parent=1 // pred_fallthru
      _
    // Predicated region
    $region14: #{siamese_forward.1} parent=1 // pred_check
      _
    $region15: #{siamese_forward.1} parent=1 // pred_check_branch
      %36 = sbr.rel (0) target = $region17
    $region16: #{siamese_forward.1} parent=1 // pred_region
      _
    $region17: #{siamese_forward.1} parent=1 // pred_fallthru
      _
    // Predicated region
    $region18: #{siamese_forward.1} parent=1 // pred_check
      _
    $region19: #{siamese_forward.1} parent=1 // pred_check_branch
      %38 = sbr.rel (0) target = $region21
    $region20: #{siamese_forward.1} parent=1 // pred_region
      _
    $region21: #{siamese_forward.1} parent=1 // pred_fallthru
      _
    // Predicated region
    $region22: #{siamese_forward.1} parent=1 // pred_check
      _
    $region23: #{siamese_forward.1} parent=1 // pred_check_branch
      %40 = sbr.rel (0) target = $region25
    $region24: #{siamese_forward.1} parent=1 // pred_region
      _
    $region25: #{siamese_forward.1} parent=1 // pred_fallthru
      _
    // Predicated region
    $region26: #{siamese_forward.1} parent=1 // pred_check
      _
    $region27: #{siamese_forward.1} parent=1 // pred_check_branch
      %42 = sbr.rel (0) target = $region29
    $region28: #{siamese_forward.1} parent=1 // pred_region
      _
    $region29: #{siamese_forward.1} parent=1 // pred_fallthru
      _
    // Predicated region
    $region30: #{siamese_forward.1} parent=1 // pred_check
      _
    $region31: #{siamese_forward.1} parent=1 // pred_check_branch
      %44 = sbr.rel (0) target = $region33
    $region32: #{siamese_forward.1} parent=1 // pred_region
      _
    $region33: #{siamese_forward.1} parent=1 // pred_fallthru
      _
    // Predicated region
    $region34: #{siamese_forward.1} parent=1 // pred_check
      _
    $region35: #{siamese_forward.1} parent=1 // pred_check_branch
      %46 = sbr.rel (0) target = $region37
    $region36: #{siamese_forward.1} parent=1 // pred_region
      _
    $region37: #{siamese_forward.1} parent=1 // pred_fallthru
      _
    // Predicated region
    $region38: #{siamese_forward.1} parent=1 // pred_check
      _
    $region39: #{siamese_forward.1} parent=1 // pred_check_branch
      %48 = sbr.rel (0) target = $region41
    $region40: #{siamese_forward.1} parent=1 // pred_region
      %49 = dma.done [#allocation3], 8192
    $region41: #{siamese_forward.1} parent=1 // pred_fallthru
      _
    %v51 = vld [vmem:[#allocation2] sm:$0xff]
    %v52 = vld [vmem:[#allocation2 + $0x8] sm:$0xff]
    %v53 = vld [vmem:[#allocation2 + $0x10] sm:$0xff]
    %v54 = vld [vmem:[#allocation2 + $0x18] sm:$0xff]
    %v55 = vld [vmem:[#allocation2 + $0x20] sm:$0xff]
    %v56 = vld [vmem:[#allocation2 + $0x28] sm:$0xff]
    %v57 = vld [vmem:[#allocation2 + $0x30] sm:$0xff]
    %v58 = vld [vmem:[#allocation2 + $0x38] sm:$0xff]
    %v59 = vld [vmem:[#allocation2 + $0x40] sm:$0xff]
    %v60 = vld [vmem:[#allocation2 + $0x48] sm:$0xff]
    %v61 = vld [vmem:[#allocation2 + $0x50] sm:$0xff]
    %v62 = vld [vmem:[#allocation2 + $0x58] sm:$0xff]
    %v63 = vld [vmem:[#allocation2 + $0x60] sm:$0xff]
    %v64 = vld [vmem:[#allocation2 + $0x68] sm:$0xff]
    %v65 = vld [vmem:[#allocation2 + $0x70] sm:$0xff]
    %v66 = vld [vmem:[#allocation2 + $0x78] sm:$0xff]
    %v67 = vld [vmem:[#allocation2 + $0x80] sm:$0xff]
    %v68 = vld [vmem:[#allocation2 + $0x88] sm:$0xff]
    %v69 = vld [vmem:[#allocation2 + $0x90] sm:$0xff]
    %v70 = vld [vmem:[#allocation2 + $0x98] sm:$0xff]
    %v71 = vld [vmem:[#allocation2 + $0xa0] sm:$0xff]
    %v72 = vld [vmem:[#allocation2 + $0xa8] sm:$0xff]
    %v73 = vld [vmem:[#allocation2 + $0xb0] sm:$0xff]
    %v74 = vld [vmem:[#allocation2 + $0xb8] sm:$0xff]
    %v75 = vld [vmem:[#allocation2 + $0xc0] sm:$0xff]
    %v76 = vld [vmem:[#allocation2 + $0xc8] sm:$0xff]
    %v77 = vld [vmem:[#allocation2 + $0xd0] sm:$0xff]
    %v78 = vld [vmem:[#allocation2 + $0xd8] sm:$0xff]
    %v79 = vld [vmem:[#allocation2 + $0xe0] sm:$0xff]
    %v80 = vld [vmem:[#allocation2 + $0xe8] sm:$0xff]
    %v81 = vld [vmem:[#allocation2 + $0xf0] sm:$0xff]
    %v82 = vld [vmem:[#allocation2 + $0xf8] sm:$0xff]
    %v83 = vld [vmem:[#allocation2 + $0x100] sm:$0xff]
    %v84 = vld [vmem:[#allocation2 + $0x108] sm:$0xff]
    %v85 = vld [vmem:[#allocation2 + $0x110] sm:$0xff]
    %v86 = vld [vmem:[#allocation2 + $0x118] sm:$0xff]
    %v87 = vld [vmem:[#allocation2 + $0x120] sm:$0xff]
    %v88 = vld [vmem:[#allocation2 + $0x128] sm:$0xff]
    %v89 = vld [vmem:[#allocation2 + $0x130] sm:$0xff]
    %v90 = vld [vmem:[#allocation2 + $0x138] sm:$0xff]
    %v91 = vld [vmem:[#allocation2 + $0x140] sm:$0xff]
    %v92 = vld [vmem:[#allocation2 + $0x148] sm:$0xff]
    %v93 = vld [vmem:[#allocation2 + $0x150] sm:$0xff]
    %v94 = vld [vmem:[#allocation2 + $0x158] sm:$0xff]
    %v95 = vld [vmem:[#allocation2 + $0x160] sm:$0xff]
    %v96 = vld [vmem:[#allocation2 + $0x168] sm:$0xff]
    %v97 = vld [vmem:[#allocation2 + $0x170] sm:$0xff]
    %v98 = vld [vmem:[#allocation2 + $0x178] sm:$0xff]
    %v99 = vld [vmem:[#allocation2 + $0x180] sm:$0xff]
    %v100 = vld [vmem:[#allocation2 + $0x188] sm:$0xff]
    %v101 = vld [vmem:[#allocation2 + $0x190] sm:$0xff]
    %v102 = vld [vmem:[#allocation2 + $0x198] sm:$0xff]
    %v103 = vld [vmem:[#allocation2 + $0x1a0] sm:$0xff]
    %v104 = vld [vmem:[#allocation2 + $0x1a8] sm:$0xff]
    %v105 = vld [vmem:[#allocation2 + $0x1b0] sm:$0xff]
    %v106 = vld [vmem:[#allocation2 + $0x1b8] sm:$0xff]
    %v107 = vld [vmem:[#allocation2 + $0x1c0] sm:$0xff]
    %v108 = vld [vmem:[#allocation2 + $0x1c8] sm:$0xff]
    %v109 = vld [vmem:[#allocation2 + $0x1d0] sm:$0xff]
    %v110 = vld [vmem:[#allocation2 + $0x1d8] sm:$0xff]
    %v111 = vld [vmem:[#allocation2 + $0x1e0] sm:$0xff]
    %v112 = vld [vmem:[#allocation2 + $0x1e8] sm:$0xff]
    %v113 = vld [vmem:[#allocation2 + $0x1f0] sm:$0xff]
    %v114 = vld [vmem:[#allocation2 + $0x1f8] sm:$0xff]
    %v115 = vunpack.c.l.s8.bf16 %v51
    %v116 = vunpack.c.l.s8.bf16 %v52
    %v117 = vunpack.c.h.s8.bf16 %v51
    %v118 = vunpack.c.h.s8.bf16 %v52
    %v119 = vunpack.c.l.s8.bf16 %v53
    %v120 = vunpack.c.l.s8.bf16 %v54
    %v121 = vunpack.c.h.s8.bf16 %v53
    %v122 = vunpack.c.h.s8.bf16 %v54
    %v123 = vunpack.c.l.s8.bf16 %v55
    %v124 = vunpack.c.l.s8.bf16 %v56
    %v125 = vunpack.c.h.s8.bf16 %v55
    %v126 = vunpack.c.h.s8.bf16 %v56
    %v127 = vunpack.c.l.s8.bf16 %v57
    %v128 = vunpack.c.l.s8.bf16 %v58
    %v129 = vunpack.c.h.s8.bf16 %v57
    %v130 = vunpack.c.h.s8.bf16 %v58
    %v131 = vunpack.c.l.s8.bf16 %v59
    %v132 = vunpack.c.l.s8.bf16 %v60
    %v133 = vunpack.c.h.s8.bf16 %v59
    %v134 = vunpack.c.h.s8.bf16 %v60
    %v135 = vunpack.c.l.s8.bf16 %v61
    %v136 = vunpack.c.l.s8.bf16 %v62
    %v137 = vunpack.c.h.s8.bf16 %v61
    %v138 = vunpack.c.h.s8.bf16 %v62
    %v139 = vunpack.c.l.s8.bf16 %v63
    %v140 = vunpack.c.l.s8.bf16 %v64
    %v141 = vunpack.c.h.s8.bf16 %v63
    %v142 = vunpack.c.h.s8.bf16 %v64
    %v143 = vunpack.c.l.s8.bf16 %v65
    %v144 = vunpack.c.l.s8.bf16 %v66
    %v145 = vunpack.c.h.s8.bf16 %v65
    %v146 = vunpack.c.h.s8.bf16 %v66
    %v147 = vunpack.c.l.s8.bf16 %v67
    %v148 = vunpack.c.l.s8.bf16 %v68
    %v149 = vunpack.c.h.s8.bf16 %v67
    %v150 = vunpack.c.h.s8.bf16 %v68
    %v151 = vunpack.c.l.s8.bf16 %v69
    %v152 = vunpack.c.l.s8.bf16 %v70
    %v153 = vunpack.c.h.s8.bf16 %v69
    %v154 = vunpack.c.h.s8.bf16 %v70
    %v155 = vunpack.c.l.s8.bf16 %v71
    %v156 = vunpack.c.l.s8.bf16 %v72
    %v157 = vunpack.c.h.s8.bf16 %v71
    %v158 = vunpack.c.h.s8.bf16 %v72
    %v159 = vunpack.c.l.s8.bf16 %v73
    %v160 = vunpack.c.l.s8.bf16 %v74
    %v161 = vunpack.c.h.s8.bf16 %v73
    %v162 = vunpack.c.h.s8.bf16 %v74
    %v163 = vunpack.c.l.s8.bf16 %v75
    %v164 = vunpack.c.l.s8.bf16 %v76
    %v165 = vunpack.c.h.s8.bf16 %v75
    %v166 = vunpack.c.h.s8.bf16 %v76
    %v167 = vunpack.c.l.s8.bf16 %v77
    %v168 = vunpack.c.l.s8.bf16 %v78
    %v169 = vunpack.c.h.s8.bf16 %v77
    %v170 = vunpack.c.h.s8.bf16 %v78
    %v171 = vunpack.c.l.s8.bf16 %v79
    %v172 = vunpack.c.l.s8.bf16 %v80
    %v173 = vunpack.c.h.s8.bf16 %v79
    %v174 = vunpack.c.h.s8.bf16 %v80
    %v175 = vunpack.c.l.s8.bf16 %v81
    %v176 = vunpack.c.l.s8.bf16 %v82
    %v177 = vunpack.c.h.s8.bf16 %v81
    %v178 = vunpack.c.h.s8.bf16 %v82
    %v179 = vunpack.c.l.s8.bf16 %v83
    %v180 = vunpack.c.l.s8.bf16 %v84
    %v181 = vunpack.c.h.s8.bf16 %v83
    %v182 = vunpack.c.h.s8.bf16 %v84
    %v183 = vunpack.c.l.s8.bf16 %v85
    %v184 = vunpack.c.l.s8.bf16 %v86
    %v185 = vunpack.c.h.s8.bf16 %v85
    %v186 = vunpack.c.h.s8.bf16 %v86
    %v187 = vunpack.c.l.s8.bf16 %v87
    %v188 = vunpack.c.l.s8.bf16 %v88
    %v189 = vunpack.c.h.s8.bf16 %v87
    %v190 = vunpack.c.h.s8.bf16 %v88
    %v191 = vunpack.c.l.s8.bf16 %v89
    %v192 = vunpack.c.l.s8.bf16 %v90
    %v193 = vunpack.c.h.s8.bf16 %v89
    %v194 = vunpack.c.h.s8.bf16 %v90
    %v195 = vunpack.c.l.s8.bf16 %v91
    %v196 = vunpack.c.l.s8.bf16 %v92
    %v197 = vunpack.c.h.s8.bf16 %v91
    %v198 = vunpack.c.h.s8.bf16 %v92
    %v199 = vunpack.c.l.s8.bf16 %v93
    %v200 = vunpack.c.l.s8.bf16 %v94
    %v201 = vunpack.c.h.s8.bf16 %v93
    %v202 = vunpack.c.h.s8.bf16 %v94
    %v203 = vunpack.c.l.s8.bf16 %v95
    %v204 = vunpack.c.l.s8.bf16 %v96
    %v205 = vunpack.c.h.s8.bf16 %v95
    %v206 = vunpack.c.h.s8.bf16 %v96
    %v207 = vunpack.c.l.s8.bf16 %v97
    %v208 = vunpack.c.l.s8.bf16 %v98
    %v209 = vunpack.c.h.s8.bf16 %v97
    %v210 = vunpack.c.h.s8.bf16 %v98
    %v211 = vunpack.c.l.s8.bf16 %v99
    %v212 = vunpack.c.l.s8.bf16 %v100
    %v213 = vunpack.c.h.s8.bf16 %v99
    %v214 = vunpack.c.h.s8.bf16 %v100
    %v215 = vunpack.c.l.s8.bf16 %v101
    %v216 = vunpack.c.l.s8.bf16 %v102
    %v217 = vunpack.c.h.s8.bf16 %v101
    %v218 = vunpack.c.h.s8.bf16 %v102
    %v219 = vunpack.c.l.s8.bf16 %v103
    %v220 = vunpack.c.l.s8.bf16 %v104
    %v221 = vunpack.c.h.s8.bf16 %v103
    %v222 = vunpack.c.h.s8.bf16 %v104
    %v223 = vunpack.c.l.s8.bf16 %v105
    %v224 = vunpack.c.l.s8.bf16 %v106
    %v225 = vunpack.c.h.s8.bf16 %v105
    %v226 = vunpack.c.h.s8.bf16 %v106
    %v227 = vunpack.c.l.s8.bf16 %v107
    %v228 = vunpack.c.l.s8.bf16 %v108
    %v229 = vunpack.c.h.s8.bf16 %v107
    %v230 = vunpack.c.h.s8.bf16 %v108
    %v231 = vunpack.c.l.s8.bf16 %v109
    %v232 = vunpack.c.l.s8.bf16 %v110
    %v233 = vunpack.c.h.s8.bf16 %v109
    %v234 = vunpack.c.h.s8.bf16 %v110
    %v235 = vunpack.c.l.s8.bf16 %v111
    %v236 = vunpack.c.l.s8.bf16 %v112
    %v237 = vunpack.c.h.s8.bf16 %v111
    %v238 = vunpack.c.h.s8.bf16 %v112
    %v239 = vunpack.c.l.s8.bf16 %v113
    %v240 = vunpack.c.l.s8.bf16 %v114
    %v241 = vunpack.c.h.s8.bf16 %v113
    %v242 = vunpack.c.h.s8.bf16 %v114
    %v243 = vld [vmem:[%s3] sm:$0x3]
    %v244 = vld [vmem:[%s4] sm:$0x3]
    %v245 = vld [vmem:[%s5] sm:$0xf]
    %v246 = vld [vmem:[%s5 + $0x4] sm:$0xf]
    %v247 = vld [vmem:[%s5 + $0x8] sm:$0xf]
    %v248 = vld [vmem:[%s5 + $0xc] sm:$0xf]
    %v249 = vld [vmem:[%s5 + $0x10] sm:$0xf]
    %v250 = vld [vmem:[%s5 + $0x14] sm:$0xf]
    %v251 = vld [vmem:[%s5 + $0x18] sm:$0xf]
    %v252 = vld [vmem:[%s5 + $0x1c] sm:$0xf]
    %v253 = vld [vmem:[%s5 + $0x20] sm:$0xf]
    %v254 = vld [vmem:[%s5 + $0x24] sm:$0xf]
    %v255 = vld [vmem:[%s5 + $0x28] sm:$0xf]
    %v256 = vld [vmem:[%s5 + $0x2c] sm:$0xf]
    %v257 = vld [vmem:[%s5 + $0x30] sm:$0xf]
    %v258 = vld [vmem:[%s5 + $0x34] sm:$0xf]
    %v259 = vld [vmem:[%s5 + $0x38] sm:$0xf]
    %v260 = vld [vmem:[%s5 + $0x3c] sm:$0xf]
    %v261 = vld [vmem:[%s5 + $0x40] sm:$0xf]
    %v262 = vld [vmem:[%s5 + $0x44] sm:$0xf]
    %v263 = vld [vmem:[%s5 + $0x48] sm:$0xf]
    %v264 = vld [vmem:[%s5 + $0x4c] sm:$0xf]
    %v265 = vld [vmem:[%s5 + $0x50] sm:$0xf]
    %v266 = vld [vmem:[%s5 + $0x54] sm:$0xf]
    %v267 = vld [vmem:[%s5 + $0x58] sm:$0xf]
    %v268 = vld [vmem:[%s5 + $0x5c] sm:$0xf]
    %v269 = vld [vmem:[%s5 + $0x60] sm:$0xf]
    %v270 = vld [vmem:[%s5 + $0x64] sm:$0xf]
    %v271 = vld [vmem:[%s5 + $0x68] sm:$0xf]
    %v272 = vld [vmem:[%s5 + $0x6c] sm:$0xf]
    %v273 = vld [vmem:[%s5 + $0x70] sm:$0xf]
    %v274 = vld [vmem:[%s5 + $0x74] sm:$0xf]
    %v275 = vld [vmem:[%s5 + $0x78] sm:$0xf]
    %v276 = vld [vmem:[%s5 + $0x7c] sm:$0xf]
    %v277 = vld [vmem:[%s6] sm:$0x1]
    %v278 = vld [vmem:[%s7] sm:$0xf]
    %v279 = vld [vmem:[%s7 + $0x4] sm:$0xf]
    %v280 = vld [vmem:[%s7 + $0x8] sm:$0xf]
    %v281 = vld [vmem:[%s7 + $0xc] sm:$0xf]
    %v282 = vld [vmem:[%s7 + $0x10] sm:$0xf]
    %v283 = vld [vmem:[%s7 + $0x14] sm:$0xf]
    %v284 = vld [vmem:[%s7 + $0x18] sm:$0xf]
    %v285 = vld [vmem:[%s7 + $0x1c] sm:$0xf]
    %v286 = vld [vmem:[%s7 + $0x20] sm:$0xf]
    %v287 = vld [vmem:[%s7 + $0x24] sm:$0xf]
    %v288 = vld [vmem:[%s7 + $0x28] sm:$0xf]
    %v289 = vld [vmem:[%s7 + $0x2c] sm:$0xf]
    %v290 = vld [vmem:[%s7 + $0x30] sm:$0xf]
    %v291 = vld [vmem:[%s7 + $0x34] sm:$0xf]
    %v292 = vld [vmem:[%s7 + $0x38] sm:$0xf]
    %v293 = vld [vmem:[%s7 + $0x3c] sm:$0xf]
    %v294 = vld [vmem:[%s8] sm:$0x1]
    %v295 = vld [vmem:[%s0] sm:$0xff]
    %v296 = vld [vmem:[%s0 + $0x8] sm:$0xff]
    %v299 = vcombine.high %v295, %v295
    %v301 = vunpack.c.l.s4 1983009808
    %v302 = vunpack.c.0.s8 %v301
    %v303 = vlaneseq
    %v304 = vshrl.u32 %v303, 7
    %v305 = vsub.s32 %v302, %v304
    %v306 = vrot.slane %v295, %v305
    %v308 = vunpack.c.l.s4 1983009808
    %v309 = vunpack.c.0.s8 %v308
    %v310 = vlaneseq
    %v311 = vshrl.u32 %v310, 7
    %v312 = vsub.s32 %v309, %v311
    %v313 = vrot.slane %v299, %v312
    %v314 = vcombine.high %v306, %v306
    %v315 = vcombine.high %v313, %v313
    %v316 = vcombine.high %v296, %v296
    %v318 = vunpack.c.l.s4 1983009808
    %v319 = vunpack.c.0.s8 %v318
    %v320 = vlaneseq
    %v321 = vshrl.u32 %v320, 7
    %v322 = vsub.s32 %v319, %v321
    %v323 = vrot.slane %v296, %v322
    %v325 = vunpack.c.l.s4 1983009808
    %v326 = vunpack.c.0.s8 %v325
    %v327 = vlaneseq
    %v328 = vshrl.u32 %v327, 7
    %v329 = vsub.s32 %v326, %v328
    %v330 = vrot.slane %v316, %v329
    %v331 = vcombine.high %v323, %v323
    %v332 = vcombine.high %v330, %v330
    %v341 = vpack.c.bf16 %v306, %v306
    %v342 = vpack.c.bf16 %v314, %v314
    %v343 = vpack.c.bf16 %v313, %v313
    %v344 = vpack.c.bf16 %v315, %v315
    %v345 = vpack.c.bf16 %v323, %v323
    %v346 = vpack.c.bf16 %v331, %v331
    %v347 = vpack.c.bf16 %v330, %v330
    %v348 = vpack.c.bf16 %v332, %v332
    %349 = vmatprep.subr.bf16.mxu0 %v116
    %350 = vmatpush1.bf16.msra.mxu0 %v115
    %351 = vmatprep.subr.bf16.mxu0 %v118
    %352 = vmatpush1.bf16.msra.mxu0 %v117
    %353 = vmatprep.subr.bf16.mxu0 %v120
    %354 = vmatpush1.bf16.msra.mxu0 %v119
    %355 = vmatprep.subr.bf16.mxu0 %v122
    %356 = vmatpush1.bf16.msra.mxu0 %v121
    %357 = vmatprep.subr.bf16.mxu0 %v124
    %358 = vmatpush1.bf16.msra.mxu0 %v123
    %359 = vmatprep.subr.bf16.mxu0 %v126
    %360 = vmatpush1.bf16.msra.mxu0 %v125
    %361 = vmatprep.subr.bf16.mxu0 %v128
    %362 = vmatpush1.bf16.msra.mxu0 %v127
    %363 = vmatprep.subr.bf16.mxu0 %v130
    %364 = vmatpush1.bf16.msra.mxu0 %v129
    %365 = vmatprep.subr.bf16.mxu0 %v132
    %366 = vmatpush1.bf16.msra.mxu0 %v131
    %367 = vmatprep.subr.bf16.mxu0 %v134
    %368 = vmatpush1.bf16.msra.mxu0 %v133
    %369 = vmatprep.subr.bf16.mxu0 %v136
    %370 = vmatpush1.bf16.msra.mxu0 %v135
    %371 = vmatprep.subr.bf16.mxu0 %v138
    %372 = vmatpush1.bf16.msra.mxu0 %v137
    %373 = vmatprep.subr.bf16.mxu0 %v140
    %374 = vmatpush1.bf16.msra.mxu0 %v139
    %375 = vmatprep.subr.bf16.mxu0 %v142
    %376 = vmatpush1.bf16.msra.mxu0 %v141
    %377 = vmatprep.subr.bf16.mxu0 %v144
    %378 = vmatpush1.bf16.msra.mxu0 %v143
    %379 = vmatprep.subr.bf16.mxu0 %v146
    %380 = vmatpush1.bf16.msra.mxu0 %v145
    %381 = vmatprep.mubr.bf16.mxu0 %v342
    %382 = vmatmul.mubr.bf16.gmra.mrb[0].mxu0 %v341
    %v383 = vpop.f32.mrb[0].mxu0
    %v384 = vadd.f32 0.0, %v383
    %v385 = vpop.f32.mrb[0].mxu0
    %v386 = vadd.f32 0.0, %v385
    %v387 = vpop.f32.mrb[0].mxu0
    %v388 = vpop.f32.mrb[0].mxu0
    %389 = vdwg.mxu0
    %390 = vmatprep.subr.bf16.mxu0 %v148
    %391 = vmatpush1.bf16.msra.mxu0 %v147
    %392 = vmatprep.subr.bf16.mxu0 %v150
    %393 = vmatpush1.bf16.msra.mxu0 %v149
    %394 = vmatprep.subr.bf16.mxu0 %v152
    %395 = vmatpush1.bf16.msra.mxu0 %v151
    %396 = vmatprep.subr.bf16.mxu0 %v154
    %397 = vmatpush1.bf16.msra.mxu0 %v153
    %398 = vmatprep.subr.bf16.mxu0 %v156
    %399 = vmatpush1.bf16.msra.mxu0 %v155
    %400 = vmatprep.subr.bf16.mxu0 %v158
    %401 = vmatpush1.bf16.msra.mxu0 %v157
    %402 = vmatprep.subr.bf16.mxu0 %v160
    %403 = vmatpush1.bf16.msra.mxu0 %v159
    %404 = vmatprep.subr.bf16.mxu0 %v162
    %405 = vmatpush1.bf16.msra.mxu0 %v161
    %406 = vmatprep.subr.bf16.mxu0 %v164
    %407 = vmatpush1.bf16.msra.mxu0 %v163
    %408 = vmatprep.subr.bf16.mxu0 %v166
    %409 = vmatpush1.bf16.msra.mxu0 %v165
    %410 = vmatprep.subr.bf16.mxu0 %v168
    %411 = vmatpush1.bf16.msra.mxu0 %v167
    %412 = vmatprep.subr.bf16.mxu0 %v170
    %413 = vmatpush1.bf16.msra.mxu0 %v169
    %414 = vmatprep.subr.bf16.mxu0 %v172
    %415 = vmatpush1.bf16.msra.mxu0 %v171
    %416 = vmatprep.subr.bf16.mxu0 %v174
    %417 = vmatpush1.bf16.msra.mxu0 %v173
    %418 = vmatprep.subr.bf16.mxu0 %v176
    %419 = vmatpush1.bf16.msra.mxu0 %v175
    %420 = vmatprep.subr.bf16.mxu0 %v178
    %421 = vmatpush1.bf16.msra.mxu0 %v177
    %422 = vmatprep.mubr.bf16.mxu0 %v344
    %423 = vmatmul.mubr.bf16.gmra.mrb[0].mxu0 %v343
    %v424 = vpop.f32.mrb[0].mxu0
    %v425 = vadd.f32 %v384, %v424
    %v426 = vpop.f32.mrb[0].mxu0
    %v427 = vadd.f32 %v386, %v426
    %v428 = vpop.f32.mrb[0].mxu0
    %v429 = vpop.f32.mrb[0].mxu0
    %430 = vdwg.mxu0
    %431 = vmatprep.subr.bf16.mxu0 %v180
    %432 = vmatpush1.bf16.msra.mxu0 %v179
    %433 = vmatprep.subr.bf16.mxu0 %v182
    %434 = vmatpush1.bf16.msra.mxu0 %v181
    %435 = vmatprep.subr.bf16.mxu0 %v184
    %436 = vmatpush1.bf16.msra.mxu0 %v183
    %437 = vmatprep.subr.bf16.mxu0 %v186
    %438 = vmatpush1.bf16.msra.mxu0 %v185
    %439 = vmatprep.subr.bf16.mxu0 %v188
    %440 = vmatpush1.bf16.msra.mxu0 %v187
    %441 = vmatprep.subr.bf16.mxu0 %v190
    %442 = vmatpush1.bf16.msra.mxu0 %v189
    %443 = vmatprep.subr.bf16.mxu0 %v192
    %444 = vmatpush1.bf16.msra.mxu0 %v191
    %445 = vmatprep.subr.bf16.mxu0 %v194
    %446 = vmatpush1.bf16.msra.mxu0 %v193
    %447 = vmatprep.subr.bf16.mxu0 %v196
    %448 = vmatpush1.bf16.msra.mxu0 %v195
    %449 = vmatprep.subr.bf16.mxu0 %v198
    %450 = vmatpush1.bf16.msra.mxu0 %v197
    %451 = vmatprep.subr.bf16.mxu0 %v200
    %452 = vmatpush1.bf16.msra.mxu0 %v199
    %453 = vmatprep.subr.bf16.mxu0 %v202
    %454 = vmatpush1.bf16.msra.mxu0 %v201
    %455 = vmatprep.subr.bf16.mxu0 %v204
    %456 = vmatpush1.bf16.msra.mxu0 %v203
    %457 = vmatprep.subr.bf16.mxu0 %v206
    %458 = vmatpush1.bf16.msra.mxu0 %v205
    %459 = vmatprep.subr.bf16.mxu0 %v208
    %460 = vmatpush1.bf16.msra.mxu0 %v207
    %461 = vmatprep.subr.bf16.mxu0 %v210
    %462 = vmatpush1.bf16.msra.mxu0 %v209
    %463 = vmatprep.mubr.bf16.mxu0 %v346
    %464 = vmatmul.mubr.bf16.gmra.mrb[0].mxu0 %v345
    %v465 = vpop.f32.mrb[0].mxu0
    %v466 = vadd.f32 %v425, %v465
    %v467 = vpop.f32.mrb[0].mxu0
    %v468 = vadd.f32 %v427, %v467
    %v469 = vpop.f32.mrb[0].mxu0
    %v470 = vpop.f32.mrb[0].mxu0
    %471 = vdwg.mxu0
    %472 = vmatprep.subr.bf16.mxu0 %v212
    %473 = vmatpush1.bf16.msra.mxu0 %v211
    %474 = vmatprep.subr.bf16.mxu0 %v214
    %475 = vmatpush1.bf16.msra.mxu0 %v213
    %476 = vmatprep.subr.bf16.mxu0 %v216
    %477 = vmatpush1.bf16.msra.mxu0 %v215
    %478 = vmatprep.subr.bf16.mxu0 %v218
    %479 = vmatpush1.bf16.msra.mxu0 %v217
    %480 = vmatprep.subr.bf16.mxu0 %v220
    %481 = vmatpush1.bf16.msra.mxu0 %v219
    %482 = vmatprep.subr.bf16.mxu0 %v222
    %483 = vmatpush1.bf16.msra.mxu0 %v221
    %484 = vmatprep.subr.bf16.mxu0 %v224
    %485 = vmatpush1.bf16.msra.mxu0 %v223
    %486 = vmatprep.subr.bf16.mxu0 %v226
    %487 = vmatpush1.bf16.msra.mxu0 %v225
    %488 = vmatprep.subr.bf16.mxu0 %v228
    %489 = vmatpush1.bf16.msra.mxu0 %v227
    %490 = vmatprep.subr.bf16.mxu0 %v230
    %491 = vmatpush1.bf16.msra.mxu0 %v229
    %492 = vmatprep.subr.bf16.mxu0 %v232
    %493 = vmatpush1.bf16.msra.mxu0 %v231
    %494 = vmatprep.subr.bf16.mxu0 %v234
    %495 = vmatpush1.bf16.msra.mxu0 %v233
    %496 = vmatprep.subr.bf16.mxu0 %v236
    %497 = vmatpush1.bf16.msra.mxu0 %v235
    %498 = vmatprep.subr.bf16.mxu0 %v238
    %499 = vmatpush1.bf16.msra.mxu0 %v237
    %500 = vmatprep.subr.bf16.mxu0 %v240
    %501 = vmatpush1.bf16.msra.mxu0 %v239
    %502 = vmatprep.subr.bf16.mxu0 %v242
    %503 = vmatpush1.bf16.msra.mxu0 %v241
    %504 = vmatprep.mubr.bf16.mxu0 %v348
    %505 = vmatmul.mubr.bf16.gmra.mrb[0].mxu0 %v347
    %v506 = vpop.f32.mrb[0].mxu0
    %v507 = vadd.f32 %v466, %v506
    %v508 = vpop.f32.mrb[0].mxu0
    %v509 = vadd.f32 %v468, %v508
    %v510 = vpop.f32.mrb[0].mxu0
    %v511 = vpop.f32.mrb[0].mxu0
    %512 = vdwg.mxu0
    %v514 = vlaneseq
    %v515 = vshrl.u32 %v514, 7
    %v516 = vsub.s32 0, %v515
    %v517 = vrot.slane %v243, %v516
    %v518 = vlaneseq
    %v519 = vshrl.u32 %v518, 7
    %v520 = vsub.s32 1, %v519
    %v521 = vrot.slane %v243, %v520
    %v524 = vmul.f32 %v507, %v517
    %v525 = vmul.f32 %v509, %v521
    %v527 = vlaneseq
    %v528 = vshrl.u32 %v527, 7
    %v529 = vsub.s32 0, %v528
    %v530 = vrot.slane %v244, %v529
    %v531 = vlaneseq
    %v532 = vshrl.u32 %v531, 7
    %v533 = vsub.s32 1, %v532
    %v534 = vrot.slane %v244, %v533
    %v537 = vadd.f32 %v524, %v530
    %v538 = vadd.f32 %v525, %v534
    %v539 = vmax.f32 %v537, 0.0
    %v540 = vmax.f32 %v538, 0.0
    %v541 = vpack.c.bf16 %v539, %v539
    %v542 = vpack.c.bf16 %v540, %v540
    %v544 = vlaneseq
    %v545 = vshrl.u32 %v544, 7
    %v546 = vsub.s32 0, %v545
    %v547 = vrot.slane %v277, %v546
    %v581 = vunpack.c.l.b16 %v245
    %v582 = vunpack.c.l.b16 %v246
    %v583 = vunpack.c.l.b16 %v247
    %v584 = vunpack.c.l.b16 %v248
    %v585 = vunpack.c.l.b16 %v249
    %v586 = vunpack.c.l.b16 %v250
    %v587 = vunpack.c.l.b16 %v251
    %v588 = vunpack.c.l.b16 %v252
    %v589 = vunpack.c.l.b16 %v253
    %v590 = vunpack.c.l.b16 %v254
    %v591 = vunpack.c.l.b16 %v255
    %v592 = vunpack.c.l.b16 %v256
    %v593 = vunpack.c.l.b16 %v257
    %v594 = vunpack.c.l.b16 %v258
    %v595 = vunpack.c.l.b16 %v259
    %v596 = vunpack.c.l.b16 %v260
    %v597 = vunpack.c.l.b16 %v261
    %v598 = vunpack.c.l.b16 %v262
    %v599 = vunpack.c.l.b16 %v263
    %v600 = vunpack.c.l.b16 %v264
    %v601 = vunpack.c.l.b16 %v265
    %v602 = vunpack.c.l.b16 %v266
    %v603 = vunpack.c.l.b16 %v267
    %v604 = vunpack.c.l.b16 %v268
    %v605 = vunpack.c.l.b16 %v269
    %v606 = vunpack.c.l.b16 %v270
    %v607 = vunpack.c.l.b16 %v271
    %v608 = vunpack.c.l.b16 %v272
    %v609 = vunpack.c.l.b16 %v273
    %v610 = vunpack.c.l.b16 %v274
    %v611 = vunpack.c.l.b16 %v275
    %v612 = vunpack.c.l.b16 %v276
    %v613 = vpack.c.b16 %v582, %v581
    %v614 = vpack.c.b16 %v584, %v583
    %v615 = vpack.c.b16 %v586, %v585
    %v616 = vpack.c.b16 %v588, %v587
    %v617 = vpack.c.b16 %v590, %v589
    %v618 = vpack.c.b16 %v592, %v591
    %v619 = vpack.c.b16 %v594, %v593
    %v620 = vpack.c.b16 %v596, %v595
    %v621 = vpack.c.b16 %v598, %v597
    %v622 = vpack.c.b16 %v600, %v599
    %v623 = vpack.c.b16 %v602, %v601
    %v624 = vpack.c.b16 %v604, %v603
    %v625 = vpack.c.b16 %v606, %v605
    %v626 = vpack.c.b16 %v608, %v607
    %v627 = vpack.c.b16 %v610, %v609
    %v628 = vpack.c.b16 %v612, %v611
    %645 = vmatprep.subr.bf16.mxu0 0
    %646 = vmatpush1.bf16.msra.mxu0 %v613
    %647 = vmatprep.subr.bf16.mxu0 0
    %648 = vmatpush1.bf16.msra.mxu0 %v614
    %649 = vmatprep.subr.bf16.mxu0 0
    %650 = vmatpush1.bf16.msra.mxu0 %v615
    %651 = vmatprep.subr.bf16.mxu0 0
    %652 = vmatpush1.bf16.msra.mxu0 %v616
    %653 = vmatprep.subr.bf16.mxu0 0
    %654 = vmatpush1.bf16.msra.mxu0 %v617
    %655 = vmatprep.subr.bf16.mxu0 0
    %656 = vmatpush1.bf16.msra.mxu0 %v618
    %657 = vmatprep.subr.bf16.mxu0 0
    %658 = vmatpush1.bf16.msra.mxu0 %v619
    %659 = vmatprep.subr.bf16.mxu0 0
    %660 = vmatpush1.bf16.msra.mxu0 %v620
    %661 = vmatprep.subr.bf16.mxu0 0
    %662 = vmatpush1.bf16.msra.mxu0 %v621
    %663 = vmatprep.subr.bf16.mxu0 0
    %664 = vmatpush1.bf16.msra.mxu0 %v622
    %665 = vmatprep.subr.bf16.mxu0 0
    %666 = vmatpush1.bf16.msra.mxu0 %v623
    %667 = vmatprep.subr.bf16.mxu0 0
    %668 = vmatpush1.bf16.msra.mxu0 %v624
    %669 = vmatprep.subr.bf16.mxu0 0
    %670 = vmatpush1.bf16.msra.mxu0 %v625
    %671 = vmatprep.subr.bf16.mxu0 0
    %672 = vmatpush1.bf16.msra.mxu0 %v626
    %673 = vmatprep.subr.bf16.mxu0 0
    %674 = vmatpush1.bf16.msra.mxu0 %v627
    %675 = vmatprep.subr.bf16.mxu0 0
    %676 = vmatpush1.bf16.msra.mxu0 %v628
    %677 = vmatprep.mubr.bf16.mxu0 %v542
    %678 = vmatmul.mubr.bf16.gmra.mrb[0].mxu0 %v541
    %v679 = vpop.f32.mrb[0].mxu0
    %v680 = vadd.f32 %v547, %v679
    %v681 = vpop.f32.mrb[0].mxu0
    %v682 = vpop.f32.mrb[0].mxu0
    %v683 = vpop.f32.mrb[0].mxu0
    %684 = vdwg.mxu0
    %v685 = vmax.f32 %v680, 0.0
    %v686 = vpack.c.bf16 %v685, %v685
    %v688 = vlaneseq
    %v689 = vshrl.u32 %v688, 7
    %v690 = vsub.s32 0, %v689
    %v691 = vrot.slane %v294, %v690
    %v709 = vunpack.c.l.b16 %v278
    %v710 = vunpack.c.l.b16 %v279
    %v711 = vunpack.c.l.b16 %v280
    %v712 = vunpack.c.l.b16 %v281
    %v713 = vunpack.c.l.b16 %v282
    %v714 = vunpack.c.l.b16 %v283
    %v715 = vunpack.c.l.b16 %v284
    %v716 = vunpack.c.l.b16 %v285
    %v717 = vunpack.c.l.b16 %v286
    %v718 = vunpack.c.l.b16 %v287
    %v719 = vunpack.c.l.b16 %v288
    %v720 = vunpack.c.l.b16 %v289
    %v721 = vunpack.c.l.b16 %v290
    %v722 = vunpack.c.l.b16 %v291
    %v723 = vunpack.c.l.b16 %v292
    %v724 = vunpack.c.l.b16 %v293
    %v725 = vpack.c.b16 %v710, %v709
    %v726 = vpack.c.b16 %v712, %v711
    %v727 = vpack.c.b16 %v714, %v713
    %v728 = vpack.c.b16 %v716, %v715
    %v729 = vpack.c.b16 %v718, %v717
    %v730 = vpack.c.b16 %v720, %v719
    %v731 = vpack.c.b16 %v722, %v721
    %v732 = vpack.c.b16 %v724, %v723
    %741 = vmatprep.subr.bf16.mxu0 0
    %742 = vmatpush1.bf16.msra.mxu0 %v725
    %743 = vmatprep.subr.bf16.mxu0 0
    %744 = vmatpush1.bf16.msra.mxu0 %v726
    %745 = vmatprep.subr.bf16.mxu0 0
    %746 = vmatpush1.bf16.msra.mxu0 %v727
    %747 = vmatprep.subr.bf16.mxu0 0
    %748 = vmatpush1.bf16.msra.mxu0 %v728
    %749 = vmatprep.subr.bf16.mxu0 0
    %750 = vmatpush1.bf16.msra.mxu0 %v729
    %751 = vmatprep.subr.bf16.mxu0 0
    %752 = vmatpush1.bf16.msra.mxu0 %v730
    %753 = vmatprep.subr.bf16.mxu0 0
    %754 = vmatpush1.bf16.msra.mxu0 %v731
    %755 = vmatprep.subr.bf16.mxu0 0
    %756 = vmatpush1.bf16.msra.mxu0 %v732
    %757 = vmatprep.subr.bf16.mxu0 0
    %758 = vmatpush1.bf16.msra.mxu0 0
    %759 = vmatprep.subr.bf16.mxu0 0
    %760 = vmatpush1.bf16.msra.mxu0 0
    %761 = vmatprep.subr.bf16.mxu0 0
    %762 = vmatpush1.bf16.msra.mxu0 0
    %763 = vmatprep.subr.bf16.mxu0 0
    %764 = vmatpush1.bf16.msra.mxu0 0
    %765 = vmatprep.subr.bf16.mxu0 0
    %766 = vmatpush1.bf16.msra.mxu0 0
    %767 = vmatprep.subr.bf16.mxu0 0
    %768 = vmatpush1.bf16.msra.mxu0 0
    %769 = vmatprep.subr.bf16.mxu0 0
    %770 = vmatpush1.bf16.msra.mxu0 0
    %771 = vmatprep.subr.bf16.mxu0 0
    %772 = vmatpush1.bf16.msra.mxu0 0
    %773 = vmatprep.mubr.bf16.mxu0 0
    %774 = vmatmul.mubr.bf16.gmra.mrb[0].mxu0 %v686
    %v775 = vpop.f32.mrb[0].mxu0
    %v776 = vadd.f32 %v691, %v775
    %v777 = vpop.f32.mrb[0].mxu0
    %v778 = vpop.f32.mrb[0].mxu0
    %v779 = vpop.f32.mrb[0].mxu0
    %780 = vdwg.mxu0
    %vm781 = vcmask 517120
    %782 = vst.msk [vmem:[#allocation5] sm:$0x3] %vm781, %v776
    %v783 = vld [vmem:[%s1] sm:$0xff]
    %v784 = vld [vmem:[%s1 + $0x8] sm:$0xff]
    %v787 = vcombine.high %v783, %v783
    %v789 = vunpack.c.l.s4 1983009808
    %v790 = vunpack.c.0.s8 %v789
    %v791 = vlaneseq
    %v792 = vshrl.u32 %v791, 7
    %v793 = vsub.s32 %v790, %v792
    %v794 = vrot.slane %v783, %v793
    %v796 = vunpack.c.l.s4 1983009808
    %v797 = vunpack.c.0.s8 %v796
    %v798 = vlaneseq
    %v799 = vshrl.u32 %v798, 7
    %v800 = vsub.s32 %v797, %v799
    %v801 = vrot.slane %v787, %v800
    %v802 = vcombine.high %v794, %v794
    %v803 = vcombine.high %v801, %v801
    %v804 = vcombine.high %v784, %v784
    %v806 = vunpack.c.l.s4 1983009808
    %v807 = vunpack.c.0.s8 %v806
    %v808 = vlaneseq
    %v809 = vshrl.u32 %v808, 7
    %v810 = vsub.s32 %v807, %v809
    %v811 = vrot.slane %v784, %v810
    %v813 = vunpack.c.l.s4 1983009808
    %v814 = vunpack.c.0.s8 %v813
    %v815 = vlaneseq
    %v816 = vshrl.u32 %v815, 7
    %v817 = vsub.s32 %v814, %v816
    %v818 = vrot.slane %v804, %v817
    %v819 = vcombine.high %v811, %v811
    %v820 = vcombine.high %v818, %v818
    %v829 = vpack.c.bf16 %v794, %v794
    %v830 = vpack.c.bf16 %v802, %v802
    %v831 = vpack.c.bf16 %v801, %v801
    %v832 = vpack.c.bf16 %v803, %v803
    %v833 = vpack.c.bf16 %v811, %v811
    %v834 = vpack.c.bf16 %v819, %v819
    %v835 = vpack.c.bf16 %v818, %v818
    %v836 = vpack.c.bf16 %v820, %v820
    %837 = vmatprep.subr.bf16.mxu0 %v116
    %838 = vmatpush1.bf16.msra.mxu0 %v115
    %839 = vmatprep.subr.bf16.mxu0 %v118
    %840 = vmatpush1.bf16.msra.mxu0 %v117
    %841 = vmatprep.subr.bf16.mxu0 %v120
    %842 = vmatpush1.bf16.msra.mxu0 %v119
    %843 = vmatprep.subr.bf16.mxu0 %v122
    %844 = vmatpush1.bf16.msra.mxu0 %v121
    %845 = vmatprep.subr.bf16.mxu0 %v124
    %846 = vmatpush1.bf16.msra.mxu0 %v123
    %847 = vmatprep.subr.bf16.mxu0 %v126
    %848 = vmatpush1.bf16.msra.mxu0 %v125
    %849 = vmatprep.subr.bf16.mxu0 %v128
    %850 = vmatpush1.bf16.msra.mxu0 %v127
    %851 = vmatprep.subr.bf16.mxu0 %v130
    %852 = vmatpush1.bf16.msra.mxu0 %v129
    %853 = vmatprep.subr.bf16.mxu0 %v132
    %854 = vmatpush1.bf16.msra.mxu0 %v131
    %855 = vmatprep.subr.bf16.mxu0 %v134
    %856 = vmatpush1.bf16.msra.mxu0 %v133
    %857 = vmatprep.subr.bf16.mxu0 %v136
    %858 = vmatpush1.bf16.msra.mxu0 %v135
    %859 = vmatprep.subr.bf16.mxu0 %v138
    %860 = vmatpush1.bf16.msra.mxu0 %v137
    %861 = vmatprep.subr.bf16.mxu0 %v140
    %862 = vmatpush1.bf16.msra.mxu0 %v139
    %863 = vmatprep.subr.bf16.mxu0 %v142
    %864 = vmatpush1.bf16.msra.mxu0 %v141
    %865 = vmatprep.subr.bf16.mxu0 %v144
    %866 = vmatpush1.bf16.msra.mxu0 %v143
    %867 = vmatprep.subr.bf16.mxu0 %v146
    %868 = vmatpush1.bf16.msra.mxu0 %v145
    %869 = vmatprep.mubr.bf16.mxu0 %v830
    %870 = vmatmul.mubr.bf16.gmra.mrb[0].mxu0 %v829
    %v871 = vpop.f32.mrb[0].mxu0
    %v872 = vadd.f32 0.0, %v871
    %v873 = vpop.f32.mrb[0].mxu0
    %v874 = vadd.f32 0.0, %v873
    %v875 = vpop.f32.mrb[0].mxu0
    %v876 = vpop.f32.mrb[0].mxu0
    %877 = vdwg.mxu0
    %878 = vmatprep.subr.bf16.mxu0 %v148
    %879 = vmatpush1.bf16.msra.mxu0 %v147
    %880 = vmatprep.subr.bf16.mxu0 %v150
    %881 = vmatpush1.bf16.msra.mxu0 %v149
    %882 = vmatprep.subr.bf16.mxu0 %v152
    %883 = vmatpush1.bf16.msra.mxu0 %v151
    %884 = vmatprep.subr.bf16.mxu0 %v154
    %885 = vmatpush1.bf16.msra.mxu0 %v153
    %886 = vmatprep.subr.bf16.mxu0 %v156
    %887 = vmatpush1.bf16.msra.mxu0 %v155
    %888 = vmatprep.subr.bf16.mxu0 %v158
    %889 = vmatpush1.bf16.msra.mxu0 %v157
    %890 = vmatprep.subr.bf16.mxu0 %v160
    %891 = vmatpush1.bf16.msra.mxu0 %v159
    %892 = vmatprep.subr.bf16.mxu0 %v162
    %893 = vmatpush1.bf16.msra.mxu0 %v161
    %894 = vmatprep.subr.bf16.mxu0 %v164
    %895 = vmatpush1.bf16.msra.mxu0 %v163
    %896 = vmatprep.subr.bf16.mxu0 %v166
    %897 = vmatpush1.bf16.msra.mxu0 %v165
    %898 = vmatprep.subr.bf16.mxu0 %v168
    %899 = vmatpush1.bf16.msra.mxu0 %v167
    %900 = vmatprep.subr.bf16.mxu0 %v170
    %901 = vmatpush1.bf16.msra.mxu0 %v169
    %902 = vmatprep.subr.bf16.mxu0 %v172
    %903 = vmatpush1.bf16.msra.mxu0 %v171
    %904 = vmatprep.subr.bf16.mxu0 %v174
    %905 = vmatpush1.bf16.msra.mxu0 %v173
    %906 = vmatprep.subr.bf16.mxu0 %v176
    %907 = vmatpush1.bf16.msra.mxu0 %v175
    %908 = vmatprep.subr.bf16.mxu0 %v178
    %909 = vmatpush1.bf16.msra.mxu0 %v177
    %910 = vmatprep.mubr.bf16.mxu0 %v832
    %911 = vmatmul.mubr.bf16.gmra.mrb[0].mxu0 %v831
    %v912 = vpop.f32.mrb[0].mxu0
    %v913 = vadd.f32 %v872, %v912
    %v914 = vpop.f32.mrb[0].mxu0
    %v915 = vadd.f32 %v874, %v914
    %v916 = vpop.f32.mrb[0].mxu0
    %v917 = vpop.f32.mrb[0].mxu0
    %918 = vdwg.mxu0
    %919 = vmatprep.subr.bf16.mxu0 %v180
    %920 = vmatpush1.bf16.msra.mxu0 %v179
    %921 = vmatprep.subr.bf16.mxu0 %v182
    %922 = vmatpush1.bf16.msra.mxu0 %v181
    %923 = vmatprep.subr.bf16.mxu0 %v184
    %924 = vmatpush1.bf16.msra.mxu0 %v183
    %925 = vmatprep.subr.bf16.mxu0 %v186
    %926 = vmatpush1.bf16.msra.mxu0 %v185
    %927 = vmatprep.subr.bf16.mxu0 %v188
    %928 = vmatpush1.bf16.msra.mxu0 %v187
    %929 = vmatprep.subr.bf16.mxu0 %v190
    %930 = vmatpush1.bf16.msra.mxu0 %v189
    %931 = vmatprep.subr.bf16.mxu0 %v192
    %932 = vmatpush1.bf16.msra.mxu0 %v191
    %933 = vmatprep.subr.bf16.mxu0 %v194
    %934 = vmatpush1.bf16.msra.mxu0 %v193
    %935 = vmatprep.subr.bf16.mxu0 %v196
    %936 = vmatpush1.bf16.msra.mxu0 %v195
    %937 = vmatprep.subr.bf16.mxu0 %v198
    %938 = vmatpush1.bf16.msra.mxu0 %v197
    %939 = vmatprep.subr.bf16.mxu0 %v200
    %940 = vmatpush1.bf16.msra.mxu0 %v199
    %941 = vmatprep.subr.bf16.mxu0 %v202
    %942 = vmatpush1.bf16.msra.mxu0 %v201
    %943 = vmatprep.subr.bf16.mxu0 %v204
    %944 = vmatpush1.bf16.msra.mxu0 %v203
    %945 = vmatprep.subr.bf16.mxu0 %v206
    %946 = vmatpush1.bf16.msra.mxu0 %v205
    %947 = vmatprep.subr.bf16.mxu0 %v208
    %948 = vmatpush1.bf16.msra.mxu0 %v207
    %949 = vmatprep.subr.bf16.mxu0 %v210
    %950 = vmatpush1.bf16.msra.mxu0 %v209
    %951 = vmatprep.mubr.bf16.mxu0 %v834
    %952 = vmatmul.mubr.bf16.gmra.mrb[0].mxu0 %v833
    %v953 = vpop.f32.mrb[0].mxu0
    %v954 = vadd.f32 %v913, %v953
    %v955 = vpop.f32.mrb[0].mxu0
    %v956 = vadd.f32 %v915, %v955
    %v957 = vpop.f32.mrb[0].mxu0
    %v958 = vpop.f32.mrb[0].mxu0
    %959 = vdwg.mxu0
    %960 = vmatprep.subr.bf16.mxu0 %v212
    %961 = vmatpush1.bf16.msra.mxu0 %v211
    %962 = vmatprep.subr.bf16.mxu0 %v214
    %963 = vmatpush1.bf16.msra.mxu0 %v213
    %964 = vmatprep.subr.bf16.mxu0 %v216
    %965 = vmatpush1.bf16.msra.mxu0 %v215
    %966 = vmatprep.subr.bf16.mxu0 %v218
    %967 = vmatpush1.bf16.msra.mxu0 %v217
    %968 = vmatprep.subr.bf16.mxu0 %v220
    %969 = vmatpush1.bf16.msra.mxu0 %v219
    %970 = vmatprep.subr.bf16.mxu0 %v222
    %971 = vmatpush1.bf16.msra.mxu0 %v221
    %972 = vmatprep.subr.bf16.mxu0 %v224
    %973 = vmatpush1.bf16.msra.mxu0 %v223
    %974 = vmatprep.subr.bf16.mxu0 %v226
    %975 = vmatpush1.bf16.msra.mxu0 %v225
    %976 = vmatprep.subr.bf16.mxu0 %v228
    %977 = vmatpush1.bf16.msra.mxu0 %v227
    %978 = vmatprep.subr.bf16.mxu0 %v230
    %979 = vmatpush1.bf16.msra.mxu0 %v229
    %980 = vmatprep.subr.bf16.mxu0 %v232
    %981 = vmatpush1.bf16.msra.mxu0 %v231
    %982 = vmatprep.subr.bf16.mxu0 %v234
    %983 = vmatpush1.bf16.msra.mxu0 %v233
    %984 = vmatprep.subr.bf16.mxu0 %v236
    %985 = vmatpush1.bf16.msra.mxu0 %v235
    %986 = vmatprep.subr.bf16.mxu0 %v238
    %987 = vmatpush1.bf16.msra.mxu0 %v237
    %988 = vmatprep.subr.bf16.mxu0 %v240
    %989 = vmatpush1.bf16.msra.mxu0 %v239
    %990 = vmatprep.subr.bf16.mxu0 %v242
    %991 = vmatpush1.bf16.msra.mxu0 %v241
    %992 = vmatprep.mubr.bf16.mxu0 %v836
    %993 = vmatmul.mubr.bf16.gmra.mrb[0].mxu0 %v835
    %v994 = vpop.f32.mrb[0].mxu0
    %v995 = vadd.f32 %v954, %v994
    %v996 = vpop.f32.mrb[0].mxu0
    %v997 = vadd.f32 %v956, %v996
    %v998 = vpop.f32.mrb[0].mxu0
    %v999 = vpop.f32.mrb[0].mxu0
    %1000 = vdwg.mxu0
    %v1001 = vmul.f32 %v995, %v517
    %v1002 = vmul.f32 %v997, %v521
    %v1003 = vadd.f32 %v1001, %v530
    %v1004 = vadd.f32 %v1002, %v534
    %v1005 = vmax.f32 %v1003, 0.0
    %v1006 = vmax.f32 %v1004, 0.0
    %v1007 = vpack.c.bf16 %v1005, %v1005
    %v1008 = vpack.c.bf16 %v1006, %v1006
    %1009 = vmatprep.subr.bf16.mxu0 0
    %1010 = vmatpush1.bf16.msra.mxu0 %v613
    %1011 = vmatprep.subr.bf16.mxu0 0
    %1012 = vmatpush1.bf16.msra.mxu0 %v614
    %1013 = vmatprep.subr.bf16.mxu0 0
    %1014 = vmatpush1.bf16.msra.mxu0 %v615
    %1015 = vmatprep.subr.bf16.mxu0 0
    %1016 = vmatpush1.bf16.msra.mxu0 %v616
    %1017 = vmatprep.subr.bf16.mxu0 0
    %1018 = vmatpush1.bf16.msra.mxu0 %v617
    %1019 = vmatprep.subr.bf16.mxu0 0
    %1020 = vmatpush1.bf16.msra.mxu0 %v618
    %1021 = vmatprep.subr.bf16.mxu0 0
    %1022 = vmatpush1.bf16.msra.mxu0 %v619
    %1023 = vmatprep.subr.bf16.mxu0 0
    %1024 = vmatpush1.bf16.msra.mxu0 %v620
    %1025 = vmatprep.subr.bf16.mxu0 0
    %1026 = vmatpush1.bf16.msra.mxu0 %v621
    %1027 = vmatprep.subr.bf16.mxu0 0
    %1028 = vmatpush1.bf16.msra.mxu0 %v622
    %1029 = vmatprep.subr.bf16.mxu0 0
    %1030 = vmatpush1.bf16.msra.mxu0 %v623
    %1031 = vmatprep.subr.bf16.mxu0 0
    %1032 = vmatpush1.bf16.msra.mxu0 %v624
    %1033 = vmatprep.subr.bf16.mxu0 0
    %1034 = vmatpush1.bf16.msra.mxu0 %v625
    %1035 = vmatprep.subr.bf16.mxu0 0
    %1036 = vmatpush1.bf16.msra.mxu0 %v626
    %1037 = vmatprep.subr.bf16.mxu0 0
    %1038 = vmatpush1.bf16.msra.mxu0 %v627
    %1039 = vmatprep.subr.bf16.mxu0 0
    %1040 = vmatpush1.bf16.msra.mxu0 %v628
    %1041 = vmatprep.mubr.bf16.mxu0 %v1008
    %1042 = vmatmul.mubr.bf16.gmra.mrb[0].mxu0 %v1007
    %v1043 = vpop.f32.mrb[0].mxu0
    %v1044 = vadd.f32 %v547, %v1043
    %v1045 = vpop.f32.mrb[0].mxu0
    %v1046 = vpop.f32.mrb[0].mxu0
    %v1047 = vpop.f32.mrb[0].mxu0
    %1048 = vdwg.mxu0
    %v1049 = vmax.f32 %v1044, 0.0
    %v1050 = vpack.c.bf16 %v1049, %v1049
    %1051 = vmatprep.subr.bf16.mxu0 0
    %1052 = vmatpush1.bf16.msra.mxu0 %v725
    %1053 = vmatprep.subr.bf16.mxu0 0
    %1054 = vmatpush1.bf16.msra.mxu0 %v726
    %1055 = vmatprep.subr.bf16.mxu0 0
    %1056 = vmatpush1.bf16.msra.mxu0 %v727
    %1057 = vmatprep.subr.bf16.mxu0 0
    %1058 = vmatpush1.bf16.msra.mxu0 %v728
    %1059 = vmatprep.subr.bf16.mxu0 0
    %1060 = vmatpush1.bf16.msra.mxu0 %v729
    %1061 = vmatprep.subr.bf16.mxu0 0
    %1062 = vmatpush1.bf16.msra.mxu0 %v730
    %1063 = vmatprep.subr.bf16.mxu0 0
    %1064 = vmatpush1.bf16.msra.mxu0 %v731
    %1065 = vmatprep.subr.bf16.mxu0 0
    %1066 = vmatpush1.bf16.msra.mxu0 %v732
    %1067 = vmatprep.subr.bf16.mxu0 0
    %1068 = vmatpush1.bf16.msra.mxu0 0
    %1069 = vmatprep.subr.bf16.mxu0 0
    %1070 = vmatpush1.bf16.msra.mxu0 0
    %1071 = vmatprep.subr.bf16.mxu0 0
    %1072 = vmatpush1.bf16.msra.mxu0 0
    %1073 = vmatprep.subr.bf16.mxu0 0
    %1074 = vmatpush1.bf16.msra.mxu0 0
    %1075 = vmatprep.subr.bf16.mxu0 0
    %1076 = vmatpush1.bf16.msra.mxu0 0
    %1077 = vmatprep.subr.bf16.mxu0 0
    %1078 = vmatpush1.bf16.msra.mxu0 0
    %1079 = vmatprep.subr.bf16.mxu0 0
    %1080 = vmatpush1.bf16.msra.mxu0 0
    %1081 = vmatprep.subr.bf16.mxu0 0
    %1082 = vmatpush1.bf16.msra.mxu0 0
    %1083 = vmatprep.mubr.bf16.mxu0 0
    %1084 = vmatmul.mubr.bf16.gmra.mrb[0].mxu0 %v1050
    %v1085 = vpop.f32.mrb[0].mxu0
    %v1086 = vadd.f32 %v691, %v1085
    %v1087 = vpop.f32.mrb[0].mxu0
    %v1088 = vpop.f32.mrb[0].mxu0
    %v1089 = vpop.f32.mrb[0].mxu0
    %1090 = vdwg.mxu0
    %1091 = vst.msk [vmem:[#allocation6] sm:$0x3] %vm781, %v1086
    // Predicated region
    $region42: #{siamese_forward.1} parent=1 // pred_check
      _
    $region43: #{siamese_forward.1} parent=1 // pred_check_branch
      %1093 = sbr.rel (0) target = $region45
    $region44: #{siamese_forward.1} parent=1 // pred_region
      %s1095 = ssub.s32 32, 32
      %1096 = vsyncadd [#allocation4], %s1095
      %s1098 = sshll.u32 [#allocation5], 4
      %s1099 = int_to_ptr.vmem [resolvable:$true] %s1098
      %1101 = dma.vmem_to_hbm [thread:$0]  %s1099, 32, %s9, [#allocation4]
    $region45: #{siamese_forward.1} parent=1 // pred_fallthru
      _
    // Predicated region
    $region46: #{siamese_forward.1} parent=1 // pred_check
      _
    $region47: #{siamese_forward.1} parent=1 // pred_check_branch
      %1103 = sbr.rel (0) target = $region49
    $region48: #{siamese_forward.1} parent=1 // pred_region
      %s1105 = ssub.s32 32, 32
      %1106 = vsyncadd [#allocation7], %s1105
      %s1108 = sshll.u32 [#allocation6], 4
      %s1109 = int_to_ptr.vmem [resolvable:$true] %s1108
      %1111 = dma.vmem_to_hbm [thread:$0]  %s1109, 32, %s10, [#allocation7]
    $region49: #{siamese_forward.1} parent=1 // pred_fallthru
      _
    // Predicated region
    $region50: #{siamese_forward.1} parent=1 // pred_check
      _
    $region51: #{siamese_forward.1} parent=1 // pred_check_branch
      %1113 = sbr.rel (0) target = $region53
    $region52: #{siamese_forward.1} parent=1 // pred_region
      %1114 = dma.done [#allocation4], 32
    $region53: #{siamese_forward.1} parent=1 // pred_fallthru
      _
    // Predicated region
    $region54: #{siamese_forward.1} parent=1 // pred_check
      _
    $region55: #{siamese_forward.1} parent=1 // pred_check_branch
      %1116 = sbr.rel (0) target = $region57
    $region56: #{siamese_forward.1} parent=1 // pred_region
      %1117 = dma.done [#allocation7], 32
    $region57: #{siamese_forward.1} parent=1 // pred_fallthru
      _
    %1118 = vsyncpa [#allocation3], 1
    %1119 = vsyncpa [#allocation4], 1
    %1120 = vsyncpa [#allocation7], 1

</llo_original>
